<compile_context>
chip_gen: v6e
topology: v6e:2x2x1
jax: 0.10.0
libtpu: 0.0.40
codegen_flags: <defaults>
</compile_context>

<pallas_src>
import functools

import jax
import jax.numpy as jnp
import numpy as np
from jax.experimental import pallas as pl
from jax.experimental.pallas import tpu as pltpu

# Row-tile for the (M, Cin) @ (Cin, Cout) matmuls.  256 rows x 256 ch x 4 B
# = 256 KiB per buffer, so (in + out) x 2 double-buffers stays far below the
# 32 MiB scoped-VMEM default even on v7x (64 MiB physical) at real FPN widths.
_BLOCK_ROWS = 256


# ----------------------------- Pallas kernels ------------------------------

def _conv1x1_kernel(x_ref, w_ref, b_ref, o_ref):
    # x: (tm, Cin), w: (Cin, Cout), b: (1, Cout), o: (tm, Cout)
    acc = jnp.dot(x_ref[...].astype(jnp.bfloat16),
                  w_ref[...].astype(jnp.bfloat16),
                  preferred_element_type=jnp.float32)
    o_ref[...] = (acc + b_ref[...]).astype(o_ref.dtype)


def _conv3x3_kernel(x_ref, w_ref, b_ref, o_ref, acc_ref):
    # Grid = (m_tiles, 9).  x: (1, tm, Cin) for tap t; w: (1, Cin, Cout);
    # b: (1, Cout); o: (tm, Cout); acc: f32 (tm, Cout) scratch.
    t = pl.program_id(1)

    @pl.when(t == 0)
    def _():
        acc_ref[...] = jnp.zeros_like(acc_ref)

    acc_ref[...] += jnp.dot(x_ref[0].astype(jnp.bfloat16),
                            w_ref[0].astype(jnp.bfloat16),
                            preferred_element_type=jnp.float32)

    @pl.when(t == pl.num_programs(1) - 1)
    def _():
        o_ref[...] = (acc_ref[...] + b_ref[...]).astype(o_ref.dtype)


def _upsample_add_kernel(ah_ref, w0_ref, w1_ref, t0_ref, t1_ref, lat_ref, o_ref):
    # Grid = (N,).  ah: (Ho, Hi) bilinear matrix along H.
    # t0/t1: (1, Hi, Wo*C) pre-gathered W-neighbours (channel-minor rows),
    # w0/w1: (1, Wo*C) per-column bilinear weights, lat/o: (1, Ho, Wo*C).
    tw = t0_ref[0] * w0_ref[...] + t1_ref[0] * w1_ref[...]          # (Hi, Wo*C)
    up = jnp.dot(ah_ref[...], tw, preferred_element_type=jnp.float32)
    o_ref[0] = (up + lat_ref[0]).astype(o_ref.dtype)


# ------------------------------ JAX wrappers --------------------------------

def conv1x1(x_nhwc, w_hwio, b, block_rows=_BLOCK_ROWS):
    N, H, W, Cin = x_nhwc.shape
    Cout = w_hwio.shape[-1]
    M = N * H * W
    x2 = x_nhwc.reshape(M, Cin)
    w2 = w_hwio.reshape(Cin, Cout)
    b2 = b.reshape(1, Cout)
    tm = min(M, block_rows)
    out = pl.pallas_call(
        _conv1x1_kernel,
        out_shape=jax.ShapeDtypeStruct((M, Cout), x_nhwc.dtype),
        grid=(pl.cdiv(M, tm),),
        in_specs=[pl.BlockSpec((tm, Cin), lambda i: (i, 0)),
                  pl.BlockSpec((Cin, Cout), lambda i: (0, 0)),
                  pl.BlockSpec((1, Cout), lambda i: (0, 0))],
        out_specs=pl.BlockSpec((tm, Cout), lambda i: (i, 0)),
        compiler_params=pltpu.CompilerParams(
            dimension_semantics=("parallel",)),
    )(x2, w2, b2)
    return out.reshape(N, H, W, Cout)


def conv3x3(x_nhwc, w_hwio, b, block_rows=_BLOCK_ROWS):
    N, H, W, Cin = x_nhwc.shape
    Cout = w_hwio.shape[-1]
    M = N * H * W
    xp = jnp.pad(x_nhwc, ((0, 0), (1, 1), (1, 1), (0, 0)))
    # 9 shifted copies of the padded input; each tap is a dense (M, Cin) matrix.
    # TODO(synk): at large resolutions the 9x duplication could be avoided with
    # halo (overlapping row-window) DMAs instead of XLA-side slicing.
    taps = jnp.stack([xp[:, kh:kh + H, kw:kw + W, :].reshape(M, Cin)
                      for kh in range(3) for kw in range(3)], axis=0)
    w9 = w_hwio.reshape(9, Cin, Cout)          # (kh*3 + kw, Cin, Cout)
    b2 = b.reshape(1, Cout)
    tm = min(M, block_rows)
    out = pl.pallas_call(
        _conv3x3_kernel,
        out_shape=jax.ShapeDtypeStruct((M, Cout), x_nhwc.dtype),
        grid=(pl.cdiv(M, tm), 9),
        in_specs=[pl.BlockSpec((1, tm, Cin), lambda i, t: (t, i, 0)),
                  pl.BlockSpec((1, Cin, Cout), lambda i, t: (t, 0, 0)),
                  pl.BlockSpec((1, Cout), lambda i, t: (0, 0))],
        out_specs=pl.BlockSpec((tm, Cout), lambda i, t: (i, 0)),
        scratch_shapes=[pltpu.VMEM((tm, Cout), jnp.float32)],
        compiler_params=pltpu.CompilerParams(
            dimension_semantics=("parallel", "arbitrary")),
    )(taps, w9, b2)
    return out.reshape(N, H, W, Cout)


@functools.lru_cache(maxsize=None)
def _bilinear_taps(out_size, in_size):
    """PyTorch F.interpolate(mode='bilinear', align_corners=False) as 2 taps."""
    scale = in_size / out_size
    src = (np.arange(out_size, dtype=np.float64) + 0.5) * scale - 0.5
    src = np.clip(src, 0.0, None)
    i0 = np.minimum(np.floor(src).astype(np.int32), in_size - 1)
    i1 = np.minimum(i0 + 1, in_size - 1)
    w1 = (src - i0).astype(np.float32)
    w0 = (1.0 - w1).astype(np.float32)
    return i0, i1, w0, w1


@functools.lru_cache(maxsize=None)
def _bilinear_matrix_np(out_size, in_size):
    i0, i1, w0, w1 = _bilinear_taps(out_size, in_size)
    A = np.zeros((out_size, in_size), np.float32)
    rows = np.arange(out_size)
    A[rows, i0] += w0
    A[rows, i1] += w1
    return A


def upsample_add(top_nhwc, lat_nhwc):
    N, Hi, Wi, C = top_nhwc.shape
    _, Ho, Wo, _ = lat_nhwc.shape
    # H-interp as a small dense matrix; W-interp as a 2-tap weighted add.
    ah = jnp.asarray(_bilinear_matrix_np(Ho, Hi))                   # (Ho, Hi)
    i0, i1, w0, w1 = _bilinear_taps(Wo, Wi)
    t0 = jnp.take(top_nhwc, jnp.asarray(i0), axis=2).reshape(N, Hi, Wo * C)
    t1 = jnp.take(top_nhwc, jnp.asarray(i1), axis=2).reshape(N, Hi, Wo * C)
    w0r = jnp.asarray(np.repeat(w0, C)).reshape(1, Wo * C)
    w1r = jnp.asarray(np.repeat(w1, C)).reshape(1, Wo * C)
    lat2 = lat_nhwc.reshape(N, Ho, Wo * C)
    out = pl.pallas_call(
        _upsample_add_kernel,
        out_shape=jax.ShapeDtypeStruct((N, Ho, Wo * C), lat_nhwc.dtype),
        grid=(N,),
        in_specs=[pl.BlockSpec((Ho, Hi), lambda n: (0, 0)),
                  pl.BlockSpec((1, Wo * C), lambda n: (0, 0)),
                  pl.BlockSpec((1, Wo * C), lambda n: (0, 0)),
                  pl.BlockSpec((1, Hi, Wo * C), lambda n: (n, 0, 0)),
                  pl.BlockSpec((1, Hi, Wo * C), lambda n: (n, 0, 0)),
                  pl.BlockSpec((1, Ho, Wo * C), lambda n: (n, 0, 0))],
        out_specs=pl.BlockSpec((1, Ho, Wo * C), lambda n: (n, 0, 0)),
        input_output_aliases={5: 0},      # accumulate into the lateral buffer
        compiler_params=pltpu.CompilerParams(
            dimension_semantics=("parallel",)),
    )(ah, w0r, w1r, t0, t1, lat2)
    return out.reshape(N, Ho, Wo, C)


# --------------------------------- FPN ---------------------------------------

class FPNPallas:
    """FPN with conv_block = Conv2d (deterministic synthetic init), top_blocks=None."""

    def __init__(self, in_channels_list, out_channels, key):
        self.params = []
        for cin in in_channels_list:
            key, k1, k2, k3, k4 = jax.random.split(key, 5)
            bound1 = float(np.sqrt(3.0 / cin))                  # kaiming-uniform, fan_in=cin
            w_in = jax.random.uniform(k1, (1, 1, cin, out_channels),
                                      jnp.float32, -bound1, bound1)
            b_in = jax.random.uniform(k2, (out_channels,), jnp.float32, -0.1, 0.1)
            bound3 = float(np.sqrt(3.0 / (out_channels * 9)))   # fan_in = cout*3*3
            w_ly = jax.random.uniform(k3, (3, 3, out_channels, out_channels),
                                      jnp.float32, -bound3, bound3)
            b_ly = jax.random.uniform(k4, (out_channels,), jnp.float32, -0.1, 0.1)
            self.params.append((w_in, b_in, w_ly, b_ly))
        # TODO(synk): top_blocks (e.g. LastLevelMaxPool) not instantiated; only top_blocks=None path.
        self.top_blocks = None
        # TODO(synk): per-level chain (1x1 -> upsample+add -> 3x3) could be fused
        # into a single pallas_call to cut HBM traffic further.

    def __call__(self, xs_nchw):
        xs = [jnp.transpose(x, (0, 2, 3, 1)) for x in xs_nchw]  # NCHW -> NHWC
        w_in, b_in, w_ly, b_ly = self.params[-1]
        last_inner = conv1x1(xs[-1], w_in, b_in)
        results = [conv3x3(last_inner, w_ly, b_ly)]
        for feat, (w_in, b_in, w_ly, b_ly) in zip(xs[:-1][::-1],
                                                  self.params[:-1][::-1]):
            inner_lateral = conv1x1(feat, w_in, b_in)
            last_inner = upsample_add(last_inner, inner_lateral)  # interpolate + add
            results.insert(0, conv3x3(last_inner, w_ly, b_ly))
        return tuple(jnp.transpose(r, (0, 3, 1, 2)) for r in results)  # NHWC -> NCHW


# ------------------------------ pure-JAX reference ---------------------------

def _ref_conv(x, w, b, pad):
    # Mirror the kernels: bf16 MXU operands, f32 accumulation + bias.
    y = jax.lax.conv_general_dilated(x.astype(jnp.bfloat16), w.astype(jnp.bfloat16),
                                     (1, 1), pad,
                                     dimension_numbers=('NHWC', 'HWIO', 'NHWC'),
                                     preferred_element_type=jnp.float32)
    return y + b.reshape(1, 1, 1, -1)


def _ref_upsample_add(top, lat):
    _, Hi, Wi, _ = top.shape
    _, Ho, Wo, _ = lat.shape
    ah = jnp.asarray(_bilinear_matrix_np(Ho, Hi))
    aw = jnp.asarray(_bilinear_matrix_np(Wo, Wi))
    up = jnp.einsum('oh,nhwc->nowc', ah, top)
    up = jnp.einsum('pw,nowc->nopc', aw, up)
    return up + lat


def _ref_forward(fpn, xs_nchw):
    xs = [jnp.transpose(x, (0, 2, 3, 1)) for x in xs_nchw]
    w_in, b_in, w_ly, b_ly = fpn.params[-1]
    last_inner = _ref_conv(xs[-1], w_in, b_in, 'VALID')
    results = [_ref_conv(last_inner, w_ly, b_ly, 'SAME')]
    for feat, (w_in, b_in, w_ly, b_ly) in zip(xs[:-1][::-1], fpn.params[:-1][::-1]):
        inner_lateral = _ref_conv(feat, w_in, b_in, 'VALID')
        last_inner = _ref_upsample_add(last_inner, inner_lateral)
        results.insert(0, _ref_conv(last_inner, w_ly, b_ly, 'SAME'))
    return tuple(jnp.transpose(r, (0, 3, 1, 2)) for r in results)


if __name__ == "__main__":
    key = jax.random.PRNGKey(0)
    kx, kp = jax.random.split(key)
    k0, k1, k2 = jax.random.split(kx, 3)
    in_channels_list = [4, 8, 16]
    out_channels = 8
    # Feature maps in increasing depth order (decreasing resolution), NCHW.
    xs = [jax.random.normal(k0, (2, 4, 16, 16), jnp.float32),
          jax.random.normal(k1, (2, 8, 8, 8), jnp.float32),
          jax.random.normal(k2, (2, 16, 4, 4), jnp.float32)]

    fpn = FPNPallas(in_channels_list, out_channels, kp)
    outs = jax.block_until_ready(fpn(xs))

    refs = _ref_forward(fpn, xs)
    for o, r in zip(outs, refs):
        assert o.shape == r.shape, (o.shape, r.shape)
        np.testing.assert_allclose(np.asarray(o), np.asarray(r),
                                   rtol=5e-3, atol=5e-3)
    print("KERNEL_OK")
</pallas_src>

<mosaic_0001>
module attributes {stable_mosaic.version = 11 : i64} {
  func.func @_conv1x1_kernel(%arg0: i32, %arg1: memref<32x16xf32, #tpu.memory_space<vmem>>, %arg2: memref<16x8xf32, #tpu.memory_space<vmem>>, %arg3: memref<1x8xf32, #tpu.memory_space<vmem>>, %arg4: memref<32x8xf32, #tpu.memory_space<vmem>>) attributes {dimension_semantics = [#tpu.dimension_semantics<parallel>], iteration_bounds = array<i64: 1>, scalar_prefetch = 0 : i64, scratch_operands = 0 : i64, tpu.core_type = #tpu.core_type<tc>, window_params = [{transform_indices = @transform_0, window_bounds = array<i64: 32, 16>}, {pipeline_mode = #tpu.pipeline_mode<synchronous>, transform_indices = @transform_1, window_bounds = array<i64: 16, 8>}, {pipeline_mode = #tpu.pipeline_mode<synchronous>, transform_indices = @transform_2, window_bounds = array<i64: 1, 8>}, {transform_indices = @transform_3, window_bounds = array<i64: 32, 8>}]} {
    %c0 = arith.constant 0 : index
    %c0_0 = arith.constant 0 : index
    %0 = vector.load %arg1[%c0, %c0_0] : memref<32x16xf32, #tpu.memory_space<vmem>>, vector<32x16xf32>
    %1 = arith.truncf %0 : vector<32x16xf32> to vector<32x16xbf16>
    %c0_1 = arith.constant 0 : index
    %c0_2 = arith.constant 0 : index
    %2 = vector.load %arg2[%c0_1, %c0_2] : memref<16x8xf32, #tpu.memory_space<vmem>>, vector<16x8xf32>
    %3 = arith.truncf %2 : vector<16x8xf32> to vector<16x8xbf16>
    %cst = arith.constant dense<0.000000e+00> : vector<32x8xf32>
    %4 = tpu.matmul %1, %3, %cst {dimension_numbers = #tpu.dot_dimension_numbers<[1], [0], [0], [1], [0, 0, 1, 1], [], []>} : vector<32x16xbf16>, vector<16x8xbf16>, vector<32x8xf32> -> vector<32x8xf32>
    %c0_3 = arith.constant 0 : index
    %c0_4 = arith.constant 0 : index
    %5 = vector.load %arg3[%c0_3, %c0_4] : memref<1x8xf32, #tpu.memory_space<vmem>>, vector<1x8xf32>
    %6 = vector.broadcast %5 : vector<1x8xf32> to vector<32x8xf32>
    %7 = arith.addf %4, %6 : vector<32x8xf32>
    %c0_5 = arith.constant 0 : index
    %c0_6 = arith.constant 0 : index
    %8 = vector.load %arg4[%c0_5, %c0_6] : memref<32x8xf32, #tpu.memory_space<vmem>>, vector<32x8xf32>
    tpu.vector_store %arg4[%c0_5, %c0_6], %7 {strides = array<i32>} : memref<32x8xf32, #tpu.memory_space<vmem>>, vector<32x8xf32>,
    return
  }
  func.func @transform_0(%arg0: i32) -> (i32, i32) {
    %c0_i32 = arith.constant 0 : i32
    %c0_i32_0 = arith.constant 0 : i32
    return %arg0, %c0_i32 : i32, i32
  }
  func.func @transform_1(%arg0: i32) -> (i32, i32) {
    %c0_i32 = arith.constant 0 : i32
    %c0_i32_0 = arith.constant 0 : i32
    %c0_i32_1 = arith.constant 0 : i32
    return %c0_i32, %c0_i32_0 : i32, i32
  }
  func.func @transform_2(%arg0: i32) -> (i32, i32) {
    %c0_i32 = arith.constant 0 : i32
    %c0_i32_0 = arith.constant 0 : i32
    %c0_i32_1 = arith.constant 0 : i32
    return %c0_i32, %c0_i32_0 : i32, i32
  }
  func.func @transform_3(%arg0: i32) -> (i32, i32) {
    %c0_i32 = arith.constant 0 : i32
    %c0_i32_0 = arith.constant 0 : i32
    return %arg0, %c0_i32 : i32, i32
  }
}

</mosaic_0001>

<llo_original>
// kernel: tpu_custom_call.1
$region0: #{tpu_custom_call.1}
  #allocation0 [shape = 'u32[]', space=smem, size = 0x4, offset = 0x4, fixed_abs, tag = 'smem constant byte address 0x4 - core index']
  #allocation1 [shape = 'u32[144,128]{1,0:T(1,128)}', space=vmem, size = 0x12000, scoped, tag = 'internal scratch']
  %s0 = inlined_call_operand.vmem [shape: f32[32,16], index: 0, kind: input, shape index: {}]
  %s1 = inlined_call_operand.vmem [shape: f32[16,8], index: 1, kind: input, shape index: {}]
  %s2 = inlined_call_operand.vmem [shape: f32[1,8], index: 2, kind: input, shape index: {}]
  %s3 = inlined_call_operand.vmem [shape: f32[32,8], index: 3, kind: output, shape index: {}]
  %s4 = sld [smem:[#allocation0]]
  $region22: #{tpu_custom_call.1} parent=0
    _
  %s6 = ssub.s32 1, %s4
  %s7 = scalar_select 0, %s6, %s4
  // Predicated region
  $region2: #{tpu_custom_call.1} parent=0 // pred_check
    _
  $region3: #{tpu_custom_call.1} parent=0 // pred_check_branch
    %9 = sbr.rel (0) target = $region5
  $region4: #{tpu_custom_call.1} parent=0 // pred_region
    _
  $region5: #{tpu_custom_call.1} parent=0 // pred_fallthru
    _
  // Predicated region
  $region6: #{tpu_custom_call.1} parent=0 // pred_check
    _
  $region7: #{tpu_custom_call.1} parent=0 // pred_check_branch
    %11 = sbr.rel (0) target = $region9
  $region8: #{tpu_custom_call.1} parent=0 // pred_region
    _
  $region9: #{tpu_custom_call.1} parent=0 // pred_fallthru
    _
  // Predicated region
  $region10: #{tpu_custom_call.1} parent=0 // pred_check
    _
  $region11: #{tpu_custom_call.1} parent=0 // pred_check_branch
    %13 = sbr.rel (0) target = $region13
  $region12: #{tpu_custom_call.1} parent=0 // pred_region
    _
  $region13: #{tpu_custom_call.1} parent=0 // pred_fallthru
    _
  %v15 = vld [vmem:[%s0] sm:$0xff]
  %v16 = vld [vmem:[%s0 + $0x8] sm:$0xff]
  %v17 = vld [vmem:[%s0 + $0x10] sm:$0xff]
  %v18 = vld [vmem:[%s0 + $0x18] sm:$0xff]
  %v19 = vpack.c.bf16 %v16, %v15
  %v20 = vpack.c.bf16 %v18, %v17
  %v21 = vld [vmem:[%s1] sm:$0xff]
  %v22 = vld [vmem:[%s1 + $0x8] sm:$0xff]
  %v23 = vpack.c.bf16 %v22, %v21
  %v24 = vld [vmem:[%s2] sm:$0x1]
  %v26 = vlaneseq
  %v27 = vshrl.u32 %v26, 7
  %v28 = vsub.s32 0, %v27
  %v29 = vrot.slane %v24, %v28
  %vm31 = vcmask 130048
  %v33 = vsel %vm31, %v19, 0
  %v36 = vsel %vm31, %v20, 0
  %38 = vmatprep.subr.bf16.mxu0 0
  %39 = vmatpush1.bf16.msra.mxu0 0
  %40 = vmatprep.subr.bf16.mxu0 0
  %41 = vmatpush1.bf16.msra.mxu0 0
  %42 = vmatprep.subr.bf16.mxu0 0
  %43 = vmatpush1.bf16.msra.mxu0 0
  %44 = vmatprep.subr.bf16.mxu0 0
  %45 = vmatpush1.bf16.msra.mxu0 0
  %46 = vmatprep.subr.bf16.mxu0 0
  %47 = vmatpush1.bf16.msra.mxu0 0
  %48 = vmatprep.subr.bf16.mxu0 0
  %49 = vmatpush1.bf16.msra.mxu0 0
  %50 = vmatprep.subr.bf16.mxu0 0
  %51 = vmatpush1.bf16.msra.mxu0 0
  %52 = vmatprep.subr.bf16.mxu0 0
  %53 = vmatpush1.bf16.msra.mxu0 %v23
  %54 = vmatprep.subr.bf16.mxu0 0
  %55 = vmatpush2.bf16.msra.mxu0 0
  %56 = vmatprep.subr.bf16.mxu0 0
  %57 = vmatpush2.bf16.msra.mxu0 0
  %58 = vmatprep.subr.bf16.mxu0 0
  %59 = vmatpush2.bf16.msra.mxu0 0
  %60 = vmatprep.subr.bf16.mxu0 0
  %61 = vmatpush2.bf16.msra.mxu0 0
  %62 = vmatprep.subr.bf16.mxu0 0
  %63 = vmatpush2.bf16.msra.mxu0 0
  %64 = vmatprep.subr.bf16.mxu0 0
  %65 = vmatpush2.bf16.msra.mxu0 0
  %66 = vmatprep.subr.bf16.mxu0 0
  %67 = vmatpush2.bf16.msra.mxu0 0
  %68 = vmatprep.subr.bf16.mxu0 0
  %69 = vmatpush2.bf16.msra.mxu0 0
  %70 = vmatprep.mubr.bf16.mxu0 0
  %71 = vmatmul.mubr.bf16.gmra.mxu0 %v33
  %v72 = vpop.f32.mrf.mxu0
  %v73 = vadd.f32 %v29, %v72
  %v74 = vpop.f32.mrf.mxu0
  %v75 = vpop.f32.mrf.mxu0
  %v76 = vadd.f32 %v29, %v75
  %v77 = vpop.f32.mrf.mxu0
  %78 = vmatprep.mubr.bf16.mxu0 0
  %79 = vmatmul.mubr.bf16.gmra.mxu0 %v36
  %v80 = vpop.f32.mrf.mxu0
  %v81 = vadd.f32 %v29, %v80
  %v82 = vpop.f32.mrf.mxu0
  %v83 = vpop.f32.mrf.mxu0
  %v84 = vadd.f32 %v29, %v83
  %v85 = vpop.f32.mrf.mxu0
  %86 = vdwg.mxu0
  %vm87 = vcmask 64512
  %88 = vst.msk [vmem:[%s3] sm:$0xff] %vm87, %v73
  %89 = vst.msk [vmem:[%s3 + $0x8] sm:$0xff] %vm87, %v76
  %90 = vst.msk [vmem:[%s3 + $0x10] sm:$0xff] %vm87, %v81
  %91 = vst.msk [vmem:[%s3 + $0x18] sm:$0xff] %vm87, %v84
  // Predicated region
  $region14: #{tpu_custom_call.1} parent=0 // pred_check
    _
  $region15: #{tpu_custom_call.1} parent=0 // pred_check_branch
    %93 = sbr.rel (0) target = $region17
  $region16: #{tpu_custom_call.1} parent=0 // pred_region
    _
  $region17: #{tpu_custom_call.1} parent=0 // pred_fallthru
    _
  // Predicated region
  $region18: #{tpu_custom_call.1} parent=0 // pred_check
    _
  $region19: #{tpu_custom_call.1} parent=0 // pred_check_branch
    %95 = sbr.rel (0) target = $region21
  $region20: #{tpu_custom_call.1} parent=0 // pred_region
    _
  $region21: #{tpu_custom_call.1} parent=0 // pred_fallthru
    _

</llo_original>
